<compile_context>
chip_gen: v7x
topology: tpu7x:2x2x1
jax: 0.10.0
libtpu: 0.0.40
codegen_flags: <defaults>
</compile_context>

<pallas_src>
import functools
import math

import jax
import jax.numpy as jnp
from jax import lax
from jax.experimental import pallas as pl
from jax.experimental.pallas import tpu as pltpu


def _round_up(x, m):
    return (x + m - 1) // m * m


def _gelu_exact(x):
    # nn.GELU() default is the exact erf-based GELU; kept exact for PyTorch parity.
    return 0.5 * x * (1.0 + lax.erf(x * (1.0 / math.sqrt(2.0))))


def _layernorm_f32(x_f32, gamma_f32, eps):
    mu = jnp.mean(x_f32, axis=-1, keepdims=True)
    var = jnp.mean(jnp.square(x_f32 - mu), axis=-1, keepdims=True)
    return (x_f32 - mu) * lax.rsqrt(var + eps) * gamma_f32


def _vmem_limit_bytes():
    # Raise the scoped-VMEM limit above the ~32 MiB default but stay well under the
    # physical capacity on every chip generation (v7x has only 64 MiB physical).
    try:
        cap = pltpu.get_tpu_info().vmem_capacity_bytes
        return int(min(96 * 1024 * 1024, (int(cap) * 3) // 4))
    except Exception:
        return None  # fall back to the compiler default


# ----------------------------------------------------------------------------------
# Fused attention block:  y = x + AttnOutProj( MHSA( LN1(x) ) )
# Grid: one batch element per step (full sequence resident in VMEM).
# ----------------------------------------------------------------------------------
def _attn_block_kernel(*refs, num_heads, head_dim, scale, eps, has_mask):
    if has_mask:
        x_ref, mask_ref, gamma_ref, wqkv_ref, wo_ref, y_ref, ctx_ref = refs
    else:
        x_ref, gamma_ref, wqkv_ref, wo_ref, y_ref, ctx_ref = refs
        mask_ref = None
    D = num_heads * head_dim
    cdt = wqkv_ref.dtype                                                # matmul dtype

    x = x_ref[0].astype(jnp.float32)                                    # (L, D)
    ln = _layernorm_f32(x, gamma_ref[...].astype(jnp.float32), eps).astype(cdt)
    # Single fused QKV projection: one MXU weight-push / one DMA instead of three.
    qkv = jnp.dot(ln, wqkv_ref[...], preferred_element_type=jnp.float32)  # (L, 3D)

    if has_mask:
        # Compact int8 {0,1} mask -> additive bias built in-kernel (0 / -1e30).
        bias = (mask_ref[0].astype(jnp.float32) - 1.0) * 1e30            # (L, L)

    # Per-head attention.  The head count is small (2..8); each head's ctx is stored
    # straight into the (L, D) VMEM scratch so per-head (L,L) intermediates die
    # immediately (bounded live set), and the output projection is done ONCE with a
    # full K=D contraction (full MXU depth) after the loop.
    for h in range(num_heads):
        lo = h * head_dim
        qh = (qkv[:, lo:lo + head_dim] * scale).astype(cdt)              # scale folded into q
        kh = qkv[:, D + lo:D + lo + head_dim].astype(cdt)
        vh = qkv[:, 2 * D + lo:2 * D + lo + head_dim].astype(cdt)
        # Contract last dims directly: no kh.T materialization / XLU transpose.
        logits = lax.dot_general(qh, kh, (((1,), (1,)), ((), ())),
                                 preferred_element_type=jnp.float32)     # (L, L)
        if has_mask:
            logits = logits + bias
        logits = logits - jnp.max(logits, axis=-1, keepdims=True)
        p = jnp.exp(logits)
        denom = jnp.sum(p, axis=-1, keepdims=True)                       # (L, 1)
        ctx = jnp.dot(p.astype(cdt), vh, preferred_element_type=jnp.float32)  # unnormalized
        # Normalize after PV: O(L*hd) multiply instead of O(L^2) divide; reciprocal on EUP.
        ctx = ctx * pl.reciprocal(denom, approx=False)
        ctx_ref[:, lo:lo + head_dim] = ctx.astype(ctx_ref.dtype)

    # Single output projection over all heads (K = D) + residual.
    y_ref[0] = (x + jnp.dot(ctx_ref[...], wo_ref[...],
                            preferred_element_type=jnp.float32)).astype(y_ref.dtype)


def attention_block_pallas(x, mask_i8, gamma1, wqkv, wo, *, head_dim, eps=1e-6):
    B, L, D = x.shape
    num_heads = D // head_dim
    scale = head_dim ** (-0.5)
    has_mask = mask_i8 is not None
    dsize = jnp.dtype(x.dtype).itemsize
    wsize = jnp.dtype(wqkv.dtype).itemsize
    flops = B * (8 * L * D * D + 4 * L * L * D)
    bytes_accessed = 2 * B * L * D * dsize + (4 * D * D + D) * wsize \
        + (B * L * L if has_mask else 0)

    kernel = functools.partial(_attn_block_kernel, num_heads=num_heads,
                               head_dim=head_dim, scale=scale, eps=eps,
                               has_mask=has_mask)
    in_specs = [pl.BlockSpec((1, L, D), lambda b: (b, 0, 0))]            # x
    operands = [x]
    if has_mask:
        in_specs.append(pl.BlockSpec((1, L, L), lambda b: (b, 0, 0)))    # int8 mask
        operands.append(mask_i8)
    # Constant index maps -> weights/gamma DMA'd only once across the batch grid.
    in_specs += [
        pl.BlockSpec((1, D),     lambda b: (0, 0)),                      # LN1 gamma
        pl.BlockSpec((D, 3 * D), lambda b: (0, 0)),                      # fused Wqkv
        pl.BlockSpec((D, D),     lambda b: (0, 0)),                      # Wo
    ]
    operands += [gamma1, wqkv, wo]

    return pl.pallas_call(
        kernel,
        out_shape=jax.ShapeDtypeStruct((B, L, D), x.dtype),
        grid_spec=pltpu.PrefetchScalarGridSpec(
            num_scalar_prefetch=0,
            grid=(B,),
            in_specs=in_specs,
            out_specs=pl.BlockSpec((1, L, D), lambda b: (b, 0, 0)),
            scratch_shapes=[pltpu.VMEM((L, D), x.dtype)],                # per-head ctx staging
        ),
        compiler_params=pltpu.CompilerParams(
            dimension_semantics=("parallel",),
            vmem_limit_bytes=_vmem_limit_bytes()),
        cost_estimate=pl.CostEstimate(flops=int(flops),
                                      transcendentals=int(B * num_heads * L * L),
                                      bytes_accessed=int(bytes_accessed)),
    )(*operands)


# ----------------------------------------------------------------------------------
# Fused MLP block:  y = x + GELU( LN2(x) @ W1 ) @ W2
# Default path: W1/W2 fully resident (constant index maps -> fetched once), grid only
# over row tiles.  Fallback path streams the hidden dim in slabs for very large hd.
# ----------------------------------------------------------------------------------
def _mlp_kernel_resident(x_ref, gamma_ref, w1_ref, w2_ref, y_ref, *, eps):
    xf = x_ref[...].astype(jnp.float32)
    ln = _layernorm_f32(xf, gamma_ref[...].astype(jnp.float32), eps).astype(w1_ref.dtype)
    h = jnp.dot(ln, w1_ref[...], preferred_element_type=jnp.float32)     # (tm, hd) MXU
    g = _gelu_exact(h).astype(w2_ref.dtype)                              # VPU
    y_ref[...] = (xf + jnp.dot(g, w2_ref[...],
                               preferred_element_type=jnp.float32)).astype(y_ref.dtype)


def _mlp_kernel_slab(x_ref, gamma_ref, w1_ref, w2_ref, y_ref, ln_ref, acc_ref, *, eps):
    kh = pl.program_id(1)

    @pl.when(kh == 0)
    def _init():
        xf = x_ref[...].astype(jnp.float32)
        acc_ref[...] = xf                                                # residual seed
        # Cache LN(x) in the matmul dtype (not f32): halves scratch, no per-slab cast.
        ln_ref[...] = _layernorm_f32(xf, gamma_ref[...].astype(jnp.float32),
                                     eps).astype(ln_ref.dtype)

    h = jnp.dot(ln_ref[...], w1_ref[...], preferred_element_type=jnp.float32)
    g = _gelu_exact(h).astype(w2_ref.dtype)
    acc_ref[...] += jnp.dot(g, w2_ref[...], preferred_element_type=jnp.float32)

    @pl.when(kh == pl.num_programs(1) - 1)
    def _finalize():
        y_ref[...] = acc_ref[...].astype(y_ref.dtype)


def _pick_hidden_slab(hd, target=1024):
    # Largest multiple of 128 that divides hd and is <= target; avoids the silent
    # "fall back to full width" behaviour for non-divisible hidden dims.
    for th in range(min(_round_up(target, 128), _round_up(hd, 128)), 0, -128):
        if th <= hd and hd % th == 0:
            return th
    return hd


def mlp_block_pallas(x, gamma2, w1, w2, *, eps=1e-6, tm=256):
    B, L, D = x.shape
    hd = w1.shape[1]
    m = B * L
    x2 = x.reshape(m, D)

    # Row tile: amortizes per-grid-step overhead and feeds the MXU M dim; rows are
    # padded (zero rows propagate to zero through LN/MLP) rather than asserted.
    # On v7x keep tm in the 128-256 range; 256-512 is fine on v5e/v6e (128 MiB VMEM).
    tm = min(tm, _round_up(m, 8))
    m_pad = _round_up(m, tm)
    if m_pad != m:
        x2 = jnp.pad(x2, ((0, m_pad - m), (0, 0)))

    dsize = jnp.dtype(x.dtype).itemsize
    wsize = jnp.dtype(w1.dtype).itemsize
    flops = 4 * m_pad * D * hd
    bytes_accessed = 2 * m_pad * D * dsize + (2 * D * hd + D) * wsize
    cparams_1d = pltpu.CompilerParams(dimension_semantics=("parallel",),
                                      vmem_limit_bytes=_vmem_limit_bytes())
    cost = pl.CostEstimate(flops=int(flops), transcendentals=int(m_pad * hd),
                           bytes_accessed=int(bytes_accessed))

    # Resident path when the double-buffered W1+W2 footprint is modest (always true at
    # nanofm's default D=512/hidden=2048): weights are DMA'd once, never re-streamed
    # per row tile.  (Single-buffering the constant-index weights via
    # pipeline_mode=pl.Buffered(1) would halve this further on v7x.)
    weights_db_bytes = 4 * D * hd * wsize
    if weights_db_bytes <= 24 * 1024 * 1024:
        out = pl.pallas_call(
            functools.partial(_mlp_kernel_resident, eps=eps),
            out_shape=jax.ShapeDtypeStruct((m_pad, D), x.dtype),
            grid_spec=pltpu.PrefetchScalarGridSpec(
                num_scalar_prefetch=0,
                grid=(m_pad // tm,),
                in_specs=[
                    pl.BlockSpec((tm, D), lambda i: (i, 0)),   # x row tile
                    pl.BlockSpec((1, D),  lambda i: (0, 0)),   # LN2 gamma (resident)
                    pl.BlockSpec((D, hd), lambda i: (0, 0)),   # W1 (resident)
                    pl.BlockSpec((hd, D), lambda i: (0, 0)),   # W2 (resident)
                ],
                out_specs=pl.BlockSpec((tm, D), lambda i: (i, 0)),
            ),
            compiler_params=cparams_1d,
            cost_estimate=cost,
        )(x2, gamma2, w1, w2)
    else:
        # Fallback: stream the hidden dim in slabs (f32 accumulator, LN cached in the
        # matmul dtype).  Note W1/W2 are re-fetched once per row tile on this path.
        th = _pick_hidden_slab(hd)
        out = pl.pallas_call(
            functools.partial(_mlp_kernel_slab, eps=eps),
            out_shape=jax.ShapeDtypeStruct((m_pad, D), x.dtype),
            grid_spec=pltpu.PrefetchScalarGridSpec(
                num_scalar_prefetch=0,
                grid=(m_pad // tm, hd // th),
                in_specs=[
                    pl.BlockSpec((tm, D), lambda i, k: (i, 0)),
                    pl.BlockSpec((1, D),  lambda i, k: (0, 0)),
                    pl.BlockSpec((D, th), lambda i, k: (0, k)),
                    pl.BlockSpec((th, D), lambda i, k: (k, 0)),
                ],
                out_specs=pl.BlockSpec((tm, D), lambda i, k: (i, 0)),
                scratch_shapes=[pltpu.VMEM((tm, D), w1.dtype),     # cached LN(x)
                                pltpu.VMEM((tm, D), jnp.float32)],  # f32 accumulator
            ),
            compiler_params=pltpu.CompilerParams(
                dimension_semantics=("parallel", "arbitrary"),
                vmem_limit_bytes=_vmem_limit_bytes()),
            cost_estimate=cost,
        )(x2, gamma2, w1, w2)
    return out[:m].reshape(B, L, D)


# ----------------------------------------------------------------------------------
# Trunk = stack of blocks
# ----------------------------------------------------------------------------------
def transformer_trunk_pallas(x, params, mask=None, *, head_dim=64, eps=1e-6):
    # mask (bool, True=attend) is passed compactly as int8 {0,1}; the additive bias is
    # built inside the kernel.  With mask=None no mask operand exists at all.
    # NOTE: fully-masked rows yield uniform attention (finite -1e30 bias) instead of
    # PyTorch's NaN from masked_fill(-inf); mirrored in trunk_reference below.
    mask_i8 = None if mask is None else mask.astype(jnp.int8)
    for p in params:
        x = attention_block_pallas(x, mask_i8, p["gamma1"], p["wqkv"], p["wo"],
                                   head_dim=head_dim, eps=eps)
        x = mlp_block_pallas(x, p["gamma2"], p["w1"], p["w2"], eps=eps)
    return x


# ----------------------------------------------------------------------------------
# Pure-JAX reference (mirrors the PyTorch module)
# ----------------------------------------------------------------------------------
def trunk_reference(x, params, mask=None, *, head_dim=64, eps=1e-6):
    B, L, D = x.shape
    nh = D // head_dim
    scale = head_dim ** (-0.5)
    if mask is None:
        bias = jnp.zeros((B, 1, L, L), jnp.float32)
    else:
        bias = jnp.where(mask[:, None, :, :], 0.0, -1e30).astype(jnp.float32)

    def ln(v, g):
        v = v.astype(jnp.float32)
        mu = jnp.mean(v, -1, keepdims=True)
        var = jnp.mean(jnp.square(v - mu), -1, keepdims=True)
        return (v - mu) / jnp.sqrt(var + eps) * g.astype(jnp.float32)

    x = x.astype(jnp.float32)
    with jax.default_matmul_precision("float32"):
        for p in params:
            h = ln(x, p["gamma1"])
            qkv = h @ p["wqkv"].astype(jnp.float32)
            q, k, v = jnp.split(qkv, 3, axis=-1)
            q = q.reshape(B, L, nh, head_dim).transpose(0, 2, 1, 3)
            k = k.reshape(B, L, nh, head_dim).transpose(0, 2, 1, 3)
            v = v.reshape(B, L, nh, head_dim).transpose(0, 2, 1, 3)
            logits = q @ k.transpose(0, 1, 3, 2) * scale + bias
            attn = jax.nn.softmax(logits, axis=-1)
            ctx = (attn @ v).transpose(0, 2, 1, 3).reshape(B, L, D)
            x = x + ctx @ p["wo"].astype(jnp.float32)
            h2 = ln(x, p["gamma2"])
            x = x + _gelu_exact(h2 @ p["w1"].astype(jnp.float32)) @ p["w2"].astype(jnp.float32)
    return x


if __name__ == "__main__":
    # Small shapes consistent with the module: dim=128 (2 heads of 64), depth=2,
    # mlp_ratio=4 -> hidden=512, batch=2, seq=8.
    DIM, DEPTH, HEAD_DIM, MLP_RATIO = 128, 2, 64, 4.0
    B, L = 2, 8
    HID = int(DIM * MLP_RATIO)

    key = jax.random.PRNGKey(0)
    key, kx = jax.random.split(key)
    x = jax.random.normal(kx, (B, L, DIM), dtype=jnp.float32)

    params = []
    for _ in range(DEPTH):
        key, k1, k2, k3, k4, k5, k6 = jax.random.split(key, 7)
        bd = 1.0 / math.sqrt(DIM)
        bh = 1.0 / math.sqrt(HID)
        wq = jax.random.uniform(k1, (DIM, DIM), jnp.float32, -bd, bd)
        wk = jax.random.uniform(k2, (DIM, DIM), jnp.float32, -bd, bd)
        wv = jax.random.uniform(k3, (DIM, DIM), jnp.float32, -bd, bd)
        params.append({
            "gamma1": jnp.ones((1, DIM), jnp.float32),
            "wqkv": jnp.concatenate([wq, wk, wv], axis=1),    # fused (D, 3D)
            "wo": jax.random.uniform(k4, (DIM, DIM), jnp.float32, -bd, bd),
            "gamma2": jnp.ones((1, DIM), jnp.float32),
            "w1": jax.random.uniform(k5, (DIM, HID), jnp.float32, -bd, bd),
            "w2": jax.random.uniform(k6, (HID, DIM), jnp.float32, -bh, bh),
        })

    # 1) f32 correctness, no mask (no mask operand at all in the kernel).
    y = jax.block_until_ready(
        transformer_trunk_pallas(x, params, mask=None, head_dim=HEAD_DIM))
    y_ref = trunk_reference(x, params, mask=None, head_dim=HEAD_DIM)
    assert y.shape == (B, L, DIM)
    assert jnp.allclose(y, y_ref, atol=1e-3, rtol=1e-3), \
        float(jnp.max(jnp.abs(y - y_ref)))

    # 2) f32 correctness with a causal mask (exercises the compact int8-mask path).
    causal = jnp.broadcast_to(jnp.tril(jnp.ones((L, L), dtype=bool))[None], (B, L, L))
    ym = jax.block_until_ready(
        transformer_trunk_pallas(x, params, mask=causal, head_dim=HEAD_DIM))
    ym_ref = trunk_reference(x, params, mask=causal, head_dim=HEAD_DIM)
    assert jnp.allclose(ym, ym_ref, atol=1e-3, rtol=1e-3), \
        float(jnp.max(jnp.abs(ym - ym_ref)))

    # 3) bf16 path (MXU fast path): finite + loosely consistent with the f32 reference.
    xb = x.astype(jnp.bfloat16)
    params_b = jax.tree_util.tree_map(lambda a: a.astype(jnp.bfloat16), params)
    yb = jax.block_until_ready(
        transformer_trunk_pallas(xb, params_b, mask=None, head_dim=HEAD_DIM))
    yb32 = yb.astype(jnp.float32)
    assert bool(jnp.isfinite(yb32).all())
    assert float(jnp.max(jnp.abs(yb32 - y_ref))) < 0.5

    print("KERNEL_OK")
</pallas_src>

<mosaic_0001>
module attributes {stable_mosaic.version = 11 : i64} {
  func.func @_attn_block_kernel(%arg0: i32, %arg1: memref<1x8x128xf32, #tpu.memory_space<vmem>>, %arg2: memref<1x128xf32, #tpu.memory_space<vmem>>, %arg3: memref<128x384xf32, #tpu.memory_space<vmem>>, %arg4: memref<128x128xf32, #tpu.memory_space<vmem>>, %arg5: memref<1x8x128xf32, #tpu.memory_space<vmem>>, %arg6: memref<8x128xf32, #tpu.memory_space<vmem>>) attributes {dimension_semantics = [#tpu.dimension_semantics<parallel>], iteration_bounds = array<i64: 2>, scalar_prefetch = 0 : i64, scratch_operands = 1 : i64, tpu.core_type = #tpu.core_type<tc>, window_params = [{transform_indices = @transform_0, window_bounds = array<i64: 1, 8, 128>}, {pipeline_mode = #tpu.pipeline_mode<synchronous>, transform_indices = @transform_1, window_bounds = array<i64: 1, 128>}, {pipeline_mode = #tpu.pipeline_mode<synchronous>, transform_indices = @transform_2, window_bounds = array<i64: 128, 384>}, {pipeline_mode = #tpu.pipeline_mode<synchronous>, transform_indices = @transform_3, window_bounds = array<i64: 128, 128>}, {transform_indices = @transform_4, window_bounds = array<i64: 1, 8, 128>}]} {
    %c0 = arith.constant 0 : index
    %c0_0 = arith.constant 0 : index
    %c0_1 = arith.constant 0 : index
    %0 = vector.load %arg1[%c0, %c0_0, %c0_1] : memref<1x8x128xf32, #tpu.memory_space<vmem>>, vector<1x8x128xf32>
    %1 = vector.shape_cast %0 : vector<1x8x128xf32> to vector<8x128xf32>
    %c0_2 = arith.constant 0 : index
    %c0_3 = arith.constant 0 : index
    %2 = vector.load %arg2[%c0_2, %c0_3] : memref<1x128xf32, #tpu.memory_space<vmem>>, vector<1x128xf32>
    %cst = arith.constant dense<0.000000e+00> : vector<8xf32>
    %3 = vector.multi_reduction <add>, %1, %cst [1] : vector<8x128xf32> to vector<8xf32>
    %4 = vector.shape_cast %3 : vector<8xf32> to vector<8x1xf32>
    %cst_4 = arith.constant 1.280000e+02 : f32
    %5 = vector.broadcast %cst_4 : f32 to vector<8x1xf32>
    %6 = arith.divf %4, %5 : vector<8x1xf32>
    %7 = vector.broadcast %6 : vector<8x1xf32> to vector<8x128xf32>
    %8 = arith.subf %1, %7 : vector<8x128xf32>
    %9 = arith.mulf %8, %8 : vector<8x128xf32>
    %cst_5 = arith.constant dense<0.000000e+00> : vector<8xf32>
    %10 = vector.multi_reduction <add>, %9, %cst_5 [1] : vector<8x128xf32> to vector<8xf32>
    %11 = vector.shape_cast %10 : vector<8xf32> to vector<8x1xf32>
    %cst_6 = arith.constant 1.280000e+02 : f32
    %12 = vector.broadcast %cst_6 : f32 to vector<8x1xf32>
    %13 = arith.divf %11, %12 : vector<8x1xf32>
    %14 = vector.broadcast %6 : vector<8x1xf32> to vector<8x128xf32>
    %15 = arith.subf %1, %14 : vector<8x128xf32>
    %cst_7 = arith.constant 9.99999997E-7 : f32
    %16 = vector.broadcast %cst_7 : f32 to vector<8x1xf32>
    %17 = arith.addf %13, %16 : vector<8x1xf32>
    %18 = math.rsqrt %17 : vector<8x1xf32>
    %19 = vector.broadcast %18 : vector<8x1xf32> to vector<8x128xf32>
    %20 = arith.mulf %15, %19 : vector<8x128xf32>
    %21 = vector.broadcast %2 : vector<1x128xf32> to vector<8x128xf32>
    %22 = arith.mulf %20, %21 : vector<8x128xf32>
    %c0_8 = arith.constant 0 : index
    %c0_9 = arith.constant 0 : index
    %23 = vector.load %arg3[%c0_8, %c0_9] : memref<128x384xf32, #tpu.memory_space<vmem>>, vector<128x384xf32>
    %cst_10 = arith.constant dense<0.000000e+00> : vector<8x384xf32>
    %24 = tpu.matmul %22, %23, %cst_10 {dimension_numbers = #tpu.dot_dimension_numbers<[1], [0], [0], [1], [0, 0, 1, 1], [], []>} : vector<8x128xf32>, vector<128x384xf32>, vector<8x384xf32> -> vector<8x384xf32>
    %25 = vector.extract_strided_slice %24 {offsets = [0, 0], sizes = [8, 64], strides = [1, 1]} : vector<8x384xf32> to vector<8x64xf32>
    %cst_11 = arith.constant 1.250000e-01 : f32
    %26 = vector.broadcast %cst_11 : f32 to vector<8x64xf32>
    %27 = arith.mulf %25, %26 : vector<8x64xf32>
    %28 = vector.extract_strided_slice %24 {offsets = [0, 128], sizes = [8, 64], strides = [1, 1]} : vector<8x384xf32> to vector<8x64xf32>
    %29 = vector.extract_strided_slice %24 {offsets = [0, 256], sizes = [8, 64], strides = [1, 1]} : vector<8x384xf32> to vector<8x64xf32>
    %cst_12 = arith.constant dense<0.000000e+00> : vector<8x8xf32>
    %30 = tpu.matmul %27, %28, %cst_12 {dimension_numbers = #tpu.dot_dimension_numbers<[1], [1], [0], [0], [0, 0, 1, 0], [], []>} : vector<8x64xf32>, vector<8x64xf32>, vector<8x8xf32> -> vector<8x8xf32>
    %cst_13 = arith.constant dense<0xFF800000> : vector<8xf32>
    %31 = vector.multi_reduction <maximumf>, %30, %cst_13 [1] : vector<8x8xf32> to vector<8xf32>
    %32 = vector.shape_cast %31 : vector<8xf32> to vector<8x1xf32>
    %33 = vector.broadcast %32 : vector<8x1xf32> to vector<8x8xf32>
    %34 = arith.subf %30, %33 : vector<8x8xf32>
    %35 = math.exp %34 : vector<8x8xf32>
    %cst_14 = arith.constant dense<0.000000e+00> : vector<8xf32>
    %36 = vector.multi_reduction <add>, %35, %cst_14 [1] : vector<8x8xf32> to vector<8xf32>
    %37 = vector.shape_cast %36 : vector<8xf32> to vector<8x1xf32>
    %cst_15 = arith.constant dense<0.000000e+00> : vector<8x64xf32>
    %38 = tpu.matmul %35, %29, %cst_15 {dimension_numbers = #tpu.dot_dimension_numbers<[1], [0], [0], [1], [0, 0, 1, 1], [], []>} : vector<8x8xf32>, vector<8x64xf32>, vector<8x64xf32> -> vector<8x64xf32>
    %39 = tpu.reciprocal %37 : vector<8x1xf32> -> vector<8x1xf32>
    %40 = vector.broadcast %39 : vector<8x1xf32> to vector<8x64xf32>
    %41 = arith.mulf %38, %40 : vector<8x64xf32>
    %c0_16 = arith.constant 0 : index
    %c0_17 = arith.constant 0 : index
    %42 = vector.load %arg6[%c0_16, %c0_17] : memref<8x128xf32, #tpu.memory_space<vmem>>, vector<8x64xf32>
    tpu.vector_store %arg6[%c0_16, %c0_17], %41 {strides = array<i32>} : memref<8x128xf32, #tpu.memory_space<vmem>>, vector<8x64xf32>,
    %43 = vector.extract_strided_slice %24 {offsets = [0, 64], sizes = [8, 64], strides = [1, 1]} : vector<8x384xf32> to vector<8x64xf32>
    %cst_18 = arith.constant 1.250000e-01 : f32
    %44 = vector.broadcast %cst_18 : f32 to vector<8x64xf32>
    %45 = arith.mulf %43, %44 : vector<8x64xf32>
    %46 = vector.extract_strided_slice %24 {offsets = [0, 192], sizes = [8, 64], strides = [1, 1]} : vector<8x384xf32> to vector<8x64xf32>
    %47 = vector.extract_strided_slice %24 {offsets = [0, 320], sizes = [8, 64], strides = [1, 1]} : vector<8x384xf32> to vector<8x64xf32>
    %cst_19 = arith.constant dense<0.000000e+00> : vector<8x8xf32>
    %48 = tpu.matmul %45, %46, %cst_19 {dimension_numbers = #tpu.dot_dimension_numbers<[1], [1], [0], [0], [0, 0, 1, 0], [], []>} : vector<8x64xf32>, vector<8x64xf32>, vector<8x8xf32> -> vector<8x8xf32>
    %cst_20 = arith.constant dense<0xFF800000> : vector<8xf32>
    %49 = vector.multi_reduction <maximumf>, %48, %cst_20 [1] : vector<8x8xf32> to vector<8xf32>
    %50 = vector.shape_cast %49 : vector<8xf32> to vector<8x1xf32>
    %51 = vector.broadcast %50 : vector<8x1xf32> to vector<8x8xf32>
    %52 = arith.subf %48, %51 : vector<8x8xf32>
    %53 = math.exp %52 : vector<8x8xf32>
    %cst_21 = arith.constant dense<0.000000e+00> : vector<8xf32>
    %54 = vector.multi_reduction <add>, %53, %cst_21 [1] : vector<8x8xf32> to vector<8xf32>
    %55 = vector.shape_cast %54 : vector<8xf32> to vector<8x1xf32>
    %cst_22 = arith.constant dense<0.000000e+00> : vector<8x64xf32>
    %56 = tpu.matmul %53, %47, %cst_22 {dimension_numbers = #tpu.dot_dimension_numbers<[1], [0], [0], [1], [0, 0, 1, 1], [], []>} : vector<8x8xf32>, vector<8x64xf32>, vector<8x64xf32> -> vector<8x64xf32>
    %57 = tpu.reciprocal %55 : vector<8x1xf32> -> vector<8x1xf32>
    %58 = vector.broadcast %57 : vector<8x1xf32> to vector<8x64xf32>
    %59 = arith.mulf %56, %58 : vector<8x64xf32>
    %c0_23 = arith.constant 0 : index
    %c64 = arith.constant 64 : index
    %60 = vector.load %arg6[%c0_23, %c64] : memref<8x128xf32, #tpu.memory_space<vmem>>, vector<8x64xf32>
    tpu.vector_store %arg6[%c0_23, %c64], %59 {strides = array<i32>} : memref<8x128xf32, #tpu.memory_space<vmem>>, vector<8x64xf32>,
    %c0_24 = arith.constant 0 : index
    %c0_25 = arith.constant 0 : index
    %61 = vector.load %arg6[%c0_24, %c0_25] : memref<8x128xf32, #tpu.memory_space<vmem>>, vector<8x128xf32>
    %c0_26 = arith.constant 0 : index
    %c0_27 = arith.constant 0 : index
    %62 = vector.load %arg4[%c0_26, %c0_27] : memref<128x128xf32, #tpu.memory_space<vmem>>, vector<128x128xf32>
    %cst_28 = arith.constant dense<0.000000e+00> : vector<8x128xf32>
    %63 = tpu.matmul %61, %62, %cst_28 {dimension_numbers = #tpu.dot_dimension_numbers<[1], [0], [0], [1], [0, 0, 1, 1], [], []>} : vector<8x128xf32>, vector<128x128xf32>, vector<8x128xf32> -> vector<8x128xf32>
    %64 = arith.addf %1, %63 : vector<8x128xf32>
    %c0_29 = arith.constant 0 : index
    %c0_30 = arith.constant 0 : index
    %c0_31 = arith.constant 0 : index
    %65 = vector.load %arg5[%c0_29, %c0_30, %c0_31] : memref<1x8x128xf32, #tpu.memory_space<vmem>>, vector<1x8x128xf32>
    %66 = vector.shape_cast %65 : vector<1x8x128xf32> to vector<8x128xf32>
    %67 = vector.shape_cast %64 : vector<8x128xf32> to vector<1x8x128xf32>
    tpu.vector_store %arg5[%c0_29, %c0_30, %c0_31], %67 {strides = array<i32>} : memref<1x8x128xf32, #tpu.memory_space<vmem>>, vector<1x8x128xf32>,
    return
  }
  func.func @transform_0(%arg0: i32) -> (i32, i32, i32) {
    %c0_i32 = arith.constant 0 : i32
    %c0_i32_0 = arith.constant 0 : i32
    %c0_i32_1 = arith.constant 0 : i32
    return %arg0, %c0_i32, %c0_i32_0 : i32, i32, i32
  }
  func.func @transform_1(%arg0: i32) -> (i32, i32) {
    %c0_i32 = arith.constant 0 : i32
    %c0_i32_0 = arith.constant 0 : i32
    %c0_i32_1 = arith.constant 0 : i32
    return %c0_i32, %c0_i32_0 : i32, i32
  }
  func.func @transform_2(%arg0: i32) -> (i32, i32) {
    %c0_i32 = arith.constant 0 : i32
    %c0_i32_0 = arith.constant 0 : i32
    %c0_i32_1 = arith.constant 0 : i32
    return %c0_i32, %c0_i32_0 : i32, i32
  }
  func.func @transform_3(%arg0: i32) -> (i32, i32) {
    %c0_i32 = arith.constant 0 : i32
    %c0_i32_0 = arith.constant 0 : i32
    %c0_i32_1 = arith.constant 0 : i32
    return %c0_i32, %c0_i32_0 : i32, i32
  }
  func.func @transform_4(%arg0: i32) -> (i32, i32, i32) {
    %c0_i32 = arith.constant 0 : i32
    %c0_i32_0 = arith.constant 0 : i32
    %c0_i32_1 = arith.constant 0 : i32
    return %arg0, %c0_i32, %c0_i32_0 : i32, i32, i32
  }
}

</mosaic_0001>

<llo_original>
// kernel: tpu_custom_call.1
$region0: #{tpu_custom_call.1}
  #allocation0 [shape = 'u32[]', space=smem, size = 0x4, offset = 0x4, fixed_abs, tag = 'smem constant byte address 0x4 - core index']
  #allocation1 [shape = 'u32[144,128]{1,0:T(1,128)}', space=vmem, size = 0x12000, scoped, tag = 'internal scratch']
  #allocation2 [shape = 'f32[8,128]{1,0:T(8,128)}', space=vmem, size = 0x1000, scoped, tag = 'scratch operand']
  %s0 = inlined_call_operand.hbm [shape: f32[2,8,128], index: 0, kind: input, shape index: {}]
  %s1 = inlined_call_operand.vmem [shape: f32[1,128], index: 1, kind: input, shape index: {}]
  %s2 = inlined_call_operand.hbm [shape: f32[128,384], index: 2, kind: input, shape index: {}]
  %s3 = inlined_call_operand.hbm [shape: f32[128,128], index: 3, kind: input, shape index: {}]
  %s4 = inlined_call_operand.hbm [shape: f32[2,8,128], index: 4, kind: output, shape index: {}]
  %s5 = sld [smem:[#allocation0]]
  $region61: #{tpu_custom_call.1} parent=0
    _
  %s7 = ssub.s32 1, %s5
  %s8 = scalar_select 0, %s7, %s5
  $region1: #{tpu_custom_call.1} parent=0
    #allocation3 [shape = 'u8[8192]{0}', space=vmem, size = 0x2000, scoped, tag = 'input window, operand 0']
    #allocation4 [shape = 's32[2]{0}', space=sflag, size = 0x8, scoped, tag = 'scoped memory for tpu_custom_call.1']
    #allocation5 [shape = 's32[2]{0}', space=sflag, size = 0x8, scoped, tag = 'scoped memory for tpu_custom_call.1']
    #allocation6 [shape = 'u8[196608]{0}', space=vmem, size = 0x30000, scoped, tag = 'input window, operand 2, single buffered']
    #allocation7 [shape = 's32[1]{0}', space=sflag, size = 0x4, scoped, tag = 'scoped memory for tpu_custom_call.1']
    #allocation8 [shape = 'u8[65536]{0}', space=vmem, size = 0x10000, scoped, tag = 'input window, operand 3, single buffered']
    #allocation9 [shape = 'u8[8192]{0}', space=vmem, size = 0x2000, scoped, tag = 'output window, operand 0']
    %9 = vsyncpa [#allocation4], 0
    %s10 = scalar_lea.sflag [#allocation4], 1
    %11 = vsyncpa %s10, 0
    %12 = vsyncpa [#allocation7], 0
    %13 = vsyncpa [#allocation5], 0
    %s14 = scalar_lea.sflag [#allocation5], 1
    %15 = vsyncpa %s14, 0
    loop: start=0, step=1, limit=4
    $region2: #{tpu_custom_call.1} parent=1 // loop_pre_header
      _
    $region3: #{tpu_custom_call.1} parent=1 // loop_header
      %s17 = sphi 0, %s21
      %p18 = scmp.ge.s32.totalorder %s17, 4
      %s27 = sphi 0, %s29
      %s30 = sphi 0, %s27
      %s31 = sphi 0, %s30
      %s47 = sphi 0, %s31
      %s51 = sphi 0, %s51
      %s53 = sphi 0, %s51
      %s54 = sphi 0, %s53
      %s68 = sphi 0, %s54
      %s72 = sphi 0, %s72
      %s74 = sphi 0, %s72
      %s75 = sphi 0, %s74
      %s89 = sphi 0, %s75
      %s93 = sphi 0, %s93
      %s95 = sphi 0, %s93
      %s96 = sphi 0, %s95
      %s110 = sphi 0, %s96
      %s116 = sphi 0, %s118
      %s119 = sphi 0, %s116
      %s120 = sphi 0, %s119
      %s136 = sphi 0, %s120
    $region4: #{tpu_custom_call.1} parent=1 // loop_header_branch
      %20 = sbr.rel (%p18) target = $region8
    $region5: #{tpu_custom_call.1} parent=1 // loop_body
      %s22 = ssub.s32 %s17, 1
      %s23 = ssub.s32 %s17, 2
      %s24 = sadd.s32 %s17, 1
      %s25 = ssub.s32 %s17, %s24
      %p26 = scmp.eq.s32.totalorder %s25, 0
      %s28 = sadd.s32 %s27, 1
      %s29 = scalar_select %p26, %s27, %s28
      %p32 = pneg %p26
      %p33 = scmp.eq.s32.totalorder %s17, 1
      %p34 = por %p32, %p33
      %p35 = scmp.ne.s32.totalorder %s27, %s30
      %p36 = scmp.eq.s32.totalorder %s17, 0
      %p37 = por %p35, %p36
      %p38 = scmp.ne.s32.totalorder %s27, %s30
      %p39 = scmp.eq.s32.totalorder %s22, 1
      %p40 = por %p38, %p39
      %p41 = scmp.ne.s32.totalorder %s30, %s31
      %p42 = scmp.eq.s32.totalorder %s22, 0
      %p43 = por %p41, %p42
      %p44 = scmp.ne.s32.totalorder %s30, %s31
      %p45 = scmp.eq.s32.totalorder %s23, 1
      %p46 = por %p44, %p45
      %p48 = scmp.ne.s32.totalorder %s31, %s47
      %p49 = scmp.eq.s32.totalorder %s23, 0
      %p50 = por %p48, %p49
      %s52 = sadd.s32 %s51, 1
      %p55 = scmp.eq.s32.totalorder %s17, 1
      %p56 = scmp.ne.s32.totalorder %s51, %s53
      %p57 = scmp.eq.s32.totalorder %s17, 0
      %p58 = por %p56, %p57
      %p59 = scmp.ne.s32.totalorder %s51, %s53
      %p60 = scmp.eq.s32.totalorder %s22, 1
      %p61 = por %p59, %p60
      %p62 = scmp.ne.s32.totalorder %s53, %s54
      %p63 = scmp.eq.s32.totalorder %s22, 0
      %p64 = por %p62, %p63
      %p65 = scmp.ne.s32.totalorder %s53, %s54
      %p66 = scmp.eq.s32.totalorder %s23, 1
      %p67 = por %p65, %p66
      %p69 = scmp.ne.s32.totalorder %s54, %s68
      %p70 = scmp.eq.s32.totalorder %s23, 0
      %p71 = por %p69, %p70
      %s73 = sadd.s32 %s72, 1
      %p76 = scmp.eq.s32.totalorder %s17, 1
      %p77 = scmp.ne.s32.totalorder %s72, %s74
      %p78 = scmp.eq.s32.totalorder %s17, 0
      %p79 = por %p77, %p78
      %p80 = scmp.ne.s32.totalorder %s72, %s74
      %p81 = scmp.eq.s32.totalorder %s22, 1
      %p82 = por %p80, %p81
      %p83 = scmp.ne.s32.totalorder %s74, %s75
      %p84 = scmp.eq.s32.totalorder %s22, 0
      %p85 = por %p83, %p84
      %p86 = scmp.ne.s32.totalorder %s74, %s75
      %p87 = scmp.eq.s32.totalorder %s23, 1
      %p88 = por %p86, %p87
      %p90 = scmp.ne.s32.totalorder %s75, %s89
      %p91 = scmp.eq.s32.totalorder %s23, 0
      %p92 = por %p90, %p91
      %s94 = sadd.s32 %s93, 1
      %p97 = scmp.eq.s32.totalorder %s17, 1
      %p98 = scmp.ne.s32.totalorder %s93, %s95
      %p99 = scmp.eq.s32.totalorder %s17, 0
      %p100 = por %p98, %p99
      %p101 = scmp.ne.s32.totalorder %s93, %s95
      %p102 = scmp.eq.s32.totalorder %s22, 1
      %p103 = por %p101, %p102
      %p104 = scmp.ne.s32.totalorder %s95, %s96
      %p105 = scmp.eq.s32.totalorder %s22, 0
      %p106 = por %p104, %p105
      %p107 = scmp.ne.s32.totalorder %s95, %s96
      %p108 = scmp.eq.s32.totalorder %s23, 1
      %p109 = por %p107, %p108
      %p111 = scmp.ne.s32.totalorder %s96, %s110
      %p112 = scmp.eq.s32.totalorder %s23, 0
      %p113 = por %p111, %p112
      %s114 = ssub.s32 %s17, %s24
      %p115 = scmp.eq.s32.totalorder %s114, 0
      %s117 = sadd.s32 %s116, 1
      %s118 = scalar_select %p115, %s116, %s117
      %p121 = pneg %p115
      %p122 = scmp.eq.s32.totalorder %s17, 1
      %p123 = por %p121, %p122
      %p124 = scmp.ne.s32.totalorder %s116, %s119
      %p125 = scmp.eq.s32.totalorder %s17, 0
      %p126 = por %p124, %p125
      %p127 = scmp.ne.s32.totalorder %s116, %s119
      %p128 = scmp.eq.s32.totalorder %s22, 1
      %p129 = por %p127, %p128
      %p130 = scmp.ne.s32.totalorder %s119, %s120
      %p131 = scmp.eq.s32.totalorder %s22, 0
      %p132 = por %p130, %p131
      %p133 = scmp.ne.s32.totalorder %s119, %s120
      %p134 = scmp.eq.s32.totalorder %s23, 1
      %p135 = por %p133, %p134
      %p137 = scmp.ne.s32.totalorder %s120, %s136
      %p138 = scmp.eq.s32.totalorder %s23, 0
      %p139 = por %p137, %p138
      %p140 = scmp.le.s32.totalorder 1, %s17
      %p141 = scmp.lt.s32.totalorder %s17, 3
      %p142 = pnand %p140, %p141
      %p143 = pneg %p142
      // Predicated region
      $region9: #{tpu_custom_call.1} parent=5 // pred_check
        _
      $region10: #{tpu_custom_call.1} parent=5 // pred_check_branch
        %145 = sbr.rel (%p142) target = $region12
      $region11: #{tpu_custom_call.1} parent=5 // pred_region
        %s146 = ssub.s32 %s17, 1
        // Predicated region
        $region13: #{tpu_custom_call.1} parent=11 // pred_check
          %p147 = pneg %p64
        $region14: #{tpu_custom_call.1} parent=11 // pred_check_branch
          %149 = sbr.rel (%p147) target = $region16
        $region15: #{tpu_custom_call.1} parent=11 // pred_region
          _
        $region16: #{tpu_custom_call.1} parent=11 // pred_fallthru
          _
        // Predicated region
        $region17: #{tpu_custom_call.1} parent=11 // pred_check
          %p150 = pneg %p85
        $region18: #{tpu_custom_call.1} parent=11 // pred_check_branch
          %152 = sbr.rel (%p150) target = $region20
        $region19: #{tpu_custom_call.1} parent=11 // pred_region
          %s154 = ssub.s32 6144, 6144
          %155 = vsyncadd [#allocation7], %s154
          %s156 = sshll.u32 [#allocation6], 4
          %s157 = int_to_ptr.vmem [resolvable:$true] %s156
          %162 = dma.hbm_to_vmem [thread:$0]  %s2, 6144, %s157, [#allocation7], 384, 384, 24
        $region20: #{tpu_custom_call.1} parent=11 // pred_fallthru
          _
        // Predicated region
        $region21: #{tpu_custom_call.1} parent=11 // pred_check
          %p163 = pneg %p106
        $region22: #{tpu_custom_call.1} parent=11 // pred_check_branch
          %165 = sbr.rel (%p163) target = $region24
        $region23: #{tpu_custom_call.1} parent=11 // pred_region
          %s167 = ssub.s32 2048, 2048
          %168 = vsyncadd [#allocation7], %s167
          %s169 = sshll.u32 [#allocation8], 4
          %s170 = int_to_ptr.vmem [resolvable:$true] %s169
          %175 = dma.hbm_to_vmem [thread:$0]  %s3, 2048, %s170, [#allocation7], 128, 128, 8
        $region24: #{tpu_custom_call.1} parent=11 // pred_fallthru
          _
      $region12: #{tpu_custom_call.1} parent=5 // pred_fallthru
        _
      %p176 = scmp.lt.s32.totalorder %s17, 2
      // Predicated region
      $region25: #{tpu_custom_call.1} parent=5 // pred_check
        %p177 = pneg %p176
      $region26: #{tpu_custom_call.1} parent=5 // pred_check_branch
        %179 = sbr.rel (%p177) target = $region28
      $region27: #{tpu_custom_call.1} parent=5 // pred_region
        // Predicated region
        $region29: #{tpu_custom_call.1} parent=27 // pred_check
          %p180 = pneg %p37
        $region30: #{tpu_custom_call.1} parent=27 // pred_check_branch
          %182 = sbr.rel (%p180) target = $region32
        $region31: #{tpu_custom_call.1} parent=27 // pred_region
          %s183 = sand.u32 %s27, 1
          %s184 = scalar_lea.sflag [#allocation4], %s183
          %s185 = sand.u32 %s27, 1
          %s186 = smul.addr %s185, 8
          %s187 = scalar_lea.vmem [#allocation3], %s186
          %s189 = ssub.s32 128, 128
          %190 = vsyncadd %s184, %s189
          %s191 = smul.addr %s17, 128
          %s192 = scalar_lea.hbm %s0, %s191
          %s194 = sshll.u32 %s187, 4
          %s195 = int_to_ptr.vmem [resolvable:$true] %s194
          %197 = dma.hbm_to_vmem [thread:$0]  %s192, 128, %s195, %s184
        $region32: #{tpu_custom_call.1} parent=27 // pred_fallthru
          _
      $region28: #{tpu_custom_call.1} parent=5 // pred_fallthru
        _
      %p198 = scmp.le.s32.totalorder 1, %s17
      %p199 = scmp.lt.s32.totalorder %s17, 3
      %p200 = pnand %p198, %p199
      %p201 = pneg %p200
      // Predicated region
      $region33: #{tpu_custom_call.1} parent=5 // pred_check
        _
      $region34: #{tpu_custom_call.1} parent=5 // pred_check_branch
        %203 = sbr.rel (%p200) target = $region36
      $region35: #{tpu_custom_call.1} parent=5 // pred_region
        %s204 = ssub.s32 %s17, 1
        %s205 = sand.u32 %s30, 1
        %s206 = scalar_lea.sflag [#allocation4], %s205
        %s207 = sand.u32 %s30, 1
        %s208 = smul.addr %s207, 8
        %s209 = scalar_lea.vmem [#allocation3], %s208
        // Predicated region
        $region37: #{tpu_custom_call.1} parent=35 // pred_check
          %p210 = pneg %p43
        $region38: #{tpu_custom_call.1} parent=35 // pred_check_branch
          %212 = sbr.rel (%p210) target = $region40
        $region39: #{tpu_custom_call.1} parent=35 // pred_region
          %213 = dma.done %s206, 128
        $region40: #{tpu_custom_call.1} parent=35 // pred_fallthru
          _
        // Predicated region
        $region41: #{tpu_custom_call.1} parent=35 // pred_check
          %p214 = pneg %p85
        $region42: #{tpu_custom_call.1} parent=35 // pred_check_branch
          %216 = sbr.rel (%p214) target = $region44
        $region43: #{tpu_custom_call.1} parent=35 // pred_region
          %217 = dma.done [#allocation7], 6144
        $region44: #{tpu_custom_call.1} parent=35 // pred_fallthru
          _
        // Predicated region
        $region45: #{tpu_custom_call.1} parent=35 // pred_check
          %p218 = pneg %p106
        $region46: #{tpu_custom_call.1} parent=35 // pred_check_branch
          %220 = sbr.rel (%p218) target = $region48
        $region47: #{tpu_custom_call.1} parent=35 // pred_region
          %221 = dma.done [#allocation7], 2048
        $region48: #{tpu_custom_call.1} parent=35 // pred_fallthru
          _
        %s222 = sand.u32 %s30, 1
        %s223 = scalar_lea.sflag [#allocation4], %s222
        %s224 = sand.u32 %s30, 1
        %s225 = smul.addr %s224, 8
        %s226 = scalar_lea.vmem [#allocation3], %s225
        %p227 = pneg %p43
        %p228 = pneg %p40
        %p229 = pneg %p64
        %p230 = pneg %p61
        %p231 = pneg %p85
        %p232 = pneg %p82
        %p233 = pneg %p106
        %p234 = pneg %p103
        %p235 = pneg %p132
        %p236 = pneg %p129
        %s237 = sand.u32 %s119, 1
        %s238 = scalar_lea.sflag [#allocation5], %s237
        %s239 = sand.u32 %s119, 1
        %s240 = smul.addr %s239, 8
        %s241 = scalar_lea.vmem [#allocation9], %s240
        %v242 = vld [vmem:[%s209] sm:$0xff]
        %v243 = vld [vmem:[%s1] sm:$0x1]
        %244 = vadd.xlane.f32.xlu0 %v242
        %v245 = vpop.xlane.xlu0 %244
        %v246 = vrcp.pop 128.0
        %v247 = vmul.f32 %v245, %v246
        %v248 = vsub.f32 %v242, %v247
        %v249 = vmul.f32 %v248, %v248
        %250 = vadd.xlane.f32.xlu0 %v249
        %v251 = vpop.xlane.xlu0 %250
        %v252 = vmul.f32 %v251, %v246
        %v253 = vadd.f32 %v252, 1e-06
        %v254 = vrsqrt.pop %v253
        %v255 = vmul.f32 %v248, %v254
        %v257 = vlaneseq
        %v258 = vshrl.u32 %v257, 7
        %v259 = vsub.s32 0, %v258
        %v260 = vrot.slane %v243, %v259
        %v262 = vmul.f32 %v255, %v260
        %v263 = vld [vmem:[#allocation6] sm:$0xff]
        %v264 = vld [vmem:[#allocation6 + $0x8] sm:$0xff]
        %v265 = vld [vmem:[#allocation6 + $0x10] sm:$0xff]
        %v266 = vld [vmem:[#allocation6 + $0x18] sm:$0xff]
        %v267 = vld [vmem:[#allocation6 + $0x20] sm:$0xff]
        %v268 = vld [vmem:[#allocation6 + $0x28] sm:$0xff]
        %v269 = vld [vmem:[#allocation6 + $0x30] sm:$0xff]
        %v270 = vld [vmem:[#allocation6 + $0x38] sm:$0xff]
        %v271 = vld [vmem:[#allocation6 + $0x40] sm:$0xff]
        %v272 = vld [vmem:[#allocation6 + $0x48] sm:$0xff]
        %v273 = vld [vmem:[#allocation6 + $0x50] sm:$0xff]
        %v274 = vld [vmem:[#allocation6 + $0x58] sm:$0xff]
        %v275 = vld [vmem:[#allocation6 + $0x60] sm:$0xff]
        %v276 = vld [vmem:[#allocation6 + $0x68] sm:$0xff]
        %v277 = vld [vmem:[#allocation6 + $0x70] sm:$0xff]
        %v278 = vld [vmem:[#allocation6 + $0x78] sm:$0xff]
        %v279 = vld [vmem:[#allocation6 + $0x80] sm:$0xff]
        %v280 = vld [vmem:[#allocation6 + $0x88] sm:$0xff]
        %v281 = vld [vmem:[#allocation6 + $0x90] sm:$0xff]
        %v282 = vld [vmem:[#allocation6 + $0x98] sm:$0xff]
        %v283 = vld [vmem:[#allocation6 + $0xa0] sm:$0xff]
        %v284 = vld [vmem:[#allocation6 + $0xa8] sm:$0xff]
        %v285 = vld [vmem:[#allocation6 + $0xb0] sm:$0xff]
        %v286 = vld [vmem:[#allocation6 + $0xb8] sm:$0xff]
        %v287 = vld [vmem:[#allocation6 + $0xc0] sm:$0xff]
        %v288 = vld [vmem:[#allocation6 + $0xc8] sm:$0xff]
        %v289 = vld [vmem:[#allocation6 + $0xd0] sm:$0xff]
        %v290 = vld [vmem:[#allocation6 + $0xd8] sm:$0xff]
        %v291 = vld [vmem:[#allocation6 + $0xe0] sm:$0xff]
        %v292 = vld [vmem:[#allocation6 + $0xe8] sm:$0xff]
        %v293 = vld [vmem:[#allocation6 + $0xf0] sm:$0xff]
        %v294 = vld [vmem:[#allocation6 + $0xf8] sm:$0xff]
        %v295 = vld [vmem:[#allocation6 + $0x100] sm:$0xff]
        %v296 = vld [vmem:[#allocation6 + $0x108] sm:$0xff]
        %v297 = vld [vmem:[#allocation6 + $0x110] sm:$0xff]
        %v298 = vld [vmem:[#allocation6 + $0x118] sm:$0xff]
        %v299 = vld [vmem:[#allocation6 + $0x120] sm:$0xff]
        %v300 = vld [vmem:[#allocation6 + $0x128] sm:$0xff]
        %v301 = vld [vmem:[#allocation6 + $0x130] sm:$0xff]
        %v302 = vld [vmem:[#allocation6 + $0x138] sm:$0xff]
        %v303 = vld [vmem:[#allocation6 + $0x140] sm:$0xff]
        %v304 = vld [vmem:[#allocation6 + $0x148] sm:$0xff]
        %v305 = vld [vmem:[#allocation6 + $0x150] sm:$0xff]
        %v306 = vld [vmem:[#allocation6 + $0x158] sm:$0xff]
        %v307 = vld [vmem:[#allocation6 + $0x160] sm:$0xff]
        %v308 = vld [vmem:[#allocation6 + $0x168] sm:$0xff]
        %v309 = vld [vmem:[#allocation6 + $0x170] sm:$0xff]
        %v310 = vld [vmem:[#allocation6 + $0x178] sm:$0xff]
        %311 = vmatprep.subr.mxu0 %v264
        %312 = vmatpush1.msra.mxu0 %v263
        %313 = vmatprep.subr.mxu0 %v267
        %314 = vmatpush1.msra.mxu0 %v266
        %315 = vmatprep.subr.mxu0 %v270
        %316 = vmatpush1.msra.mxu0 %v269
        %317 = vmatprep.subr.mxu0 %v273
        %318 = vmatpush1.msra.mxu0 %v272
        %319 = vmatprep.subr.mxu0 %v276
        %320 = vmatpush1.msra.mxu0 %v275
        %321 = vmatprep.subr.mxu0 %v279
        %322 = vmatpush1.msra.mxu0 %v278
        %323 = vmatprep.subr.mxu0 %v282
        %324 = vmatpush1.msra.mxu0 %v281
        %325 = vmatprep.subr.mxu0 %v285
        %326 = vmatpush1.msra.mxu0 %v284
        %327 = vmatprep.subr.mxu0 %v288
        %328 = vmatpush1.msra.mxu0 %v287
        %329 = vmatprep.subr.mxu0 %v291
        %330 = vmatpush1.msra.mxu0 %v290
        %331 = vmatprep.subr.mxu0 %v294
        %332 = vmatpush1.msra.mxu0 %v293
        %333 = vmatprep.subr.mxu0 %v297
        %334 = vmatpush1.msra.mxu0 %v296
        %335 = vmatprep.subr.mxu0 %v300
        %336 = vmatpush1.msra.mxu0 %v299
        %337 = vmatprep.subr.mxu0 %v303
        %338 = vmatpush1.msra.mxu0 %v302
        %339 = vmatprep.subr.mxu0 %v306
        %340 = vmatpush1.msra.mxu0 %v305
        %341 = vmatprep.subr.mxu0 %v309
        %342 = vmatpush1.msra.mxu0 %v308
        %343 = vmatprep.subr.mxu0 0.0
        %344 = vmatpush1.msra.mxu0 0.0
        %345 = vmatprep.subr.mxu0 0.0
        %346 = vmatpush1.msra.mxu0 0.0
        %347 = vmatprep.subr.mxu0 0.0
        %348 = vmatpush1.msra.mxu0 0.0
        %349 = vmatprep.subr.mxu0 0.0
        %350 = vmatpush1.msra.mxu0 0.0
        %351 = vmatprep.subr.mxu0 0.0
        %352 = vmatpush1.msra.mxu0 0.0
        %353 = vmatprep.subr.mxu0 0.0
        %354 = vmatpush1.msra.mxu0 0.0
        %355 = vmatprep.subr.mxu0 0.0
        %356 = vmatpush1.msra.mxu0 0.0
        %357 = vmatprep.subr.mxu0 0.0
        %358 = vmatpush1.msra.mxu0 0.0
        %359 = vmatprep.subr.mxu0 0.0
        %360 = vmatpush1.msra.mxu0 0.0
        %361 = vmatprep.subr.mxu0 0.0
        %362 = vmatpush1.msra.mxu0 0.0
        %363 = vmatprep.subr.mxu0 0.0
        %364 = vmatpush1.msra.mxu0 0.0
        %365 = vmatprep.subr.mxu0 0.0
        %366 = vmatpush1.msra.mxu0 0.0
        %367 = vmatprep.subr.mxu0 0.0
        %368 = vmatpush1.msra.mxu0 0.0
        %369 = vmatprep.subr.mxu0 0.0
        %370 = vmatpush1.msra.mxu0 0.0
        %371 = vmatprep.subr.mxu0 0.0
        %372 = vmatpush1.msra.mxu0 0.0
        %373 = vmatprep.subr.mxu0 0.0
        %374 = vmatpush1.msra.mxu0 0.0
        %375 = vmatprep.mubr.f32.mxu0 0.0
        %376 = vmatmul.mubr.f32.gmra.mrb[0].mxu0 %v262
        %v377 = vpop.f32.mrb[0].mxu0
        %v378 = vadd.f32 0.0, %v377
        %v379 = vpop.f32.mrb[0].mxu0
        %v380 = vadd.f32 0.0, %v379
        %381 = vdwg.mxu0
        %382 = vmatprep.subr.mxu0 0.0
        %383 = vmatpush1.msra.mxu0 %v265
        %384 = vmatprep.subr.mxu0 0.0
        %385 = vmatpush1.msra.mxu0 %v268
        %386 = vmatprep.subr.mxu0 0.0
        %387 = vmatpush1.msra.mxu0 %v271
        %388 = vmatprep.subr.mxu0 0.0
        %389 = vmatpush1.msra.mxu0 %v274
        %390 = vmatprep.subr.mxu0 0.0
        %391 = vmatpush1.msra.mxu0 %v277
        %392 = vmatprep.subr.mxu0 0.0
        %393 = vmatpush1.msra.mxu0 %v280
        %394 = vmatprep.subr.mxu0 0.0
        %395 = vmatpush1.msra.mxu0 %v283
        %396 = vmatprep.subr.mxu0 0.0
        %397 = vmatpush1.msra.mxu0 %v286
        %398 = vmatprep.subr.mxu0 0.0
        %399 = vmatpush1.msra.mxu0 %v289
        %400 = vmatprep.subr.mxu0 0.0
        %401 = vmatpush1.msra.mxu0 %v292
        %402 = vmatprep.subr.mxu0 0.0
        %403 = vmatpush1.msra.mxu0 %v295
        %404 = vmatprep.subr.mxu0 0.0
        %405 = vmatpush1.msra.mxu0 %v298
        %406 = vmatprep.subr.mxu0 0.0
        %407 = vmatpush1.msra.mxu0 %v301
        %408 = vmatprep.subr.mxu0 0.0
        %409 = vmatpush1.msra.mxu0 %v304
        %410 = vmatprep.subr.mxu0 0.0
        %411 = vmatpush1.msra.mxu0 %v307
        %412 = vmatprep.subr.mxu0 0.0
        %413 = vmatpush1.msra.mxu0 %v310
        %414 = vmatprep.subr.mxu0 0.0
        %415 = vmatpush1.msra.mxu0 0.0
        %416 = vmatprep.subr.mxu0 0.0
        %417 = vmatpush1.msra.mxu0 0.0
        %418 = vmatprep.subr.mxu0 0.0
        %419 = vmatpush1.msra.mxu0 0.0
        %420 = vmatprep.subr.mxu0 0.0
        %421 = vmatpush1.msra.mxu0 0.0
        %422 = vmatprep.subr.mxu0 0.0
        %423 = vmatpush1.msra.mxu0 0.0
        %424 = vmatprep.subr.mxu0 0.0
        %425 = vmatpush1.msra.mxu0 0.0
        %426 = vmatprep.subr.mxu0 0.0
        %427 = vmatpush1.msra.mxu0 0.0
        %428 = vmatprep.subr.mxu0 0.0
        %429 = vmatpush1.msra.mxu0 0.0
        %430 = vmatprep.subr.mxu0 0.0
        %431 = vmatpush1.msra.mxu0 0.0
        %432 = vmatprep.subr.mxu0 0.0
        %433 = vmatpush1.msra.mxu0 0.0
        %434 = vmatprep.subr.mxu0 0.0
        %435 = vmatpush1.msra.mxu0 0.0
        %436 = vmatprep.subr.mxu0 0.0
        %437 = vmatpush1.msra.mxu0 0.0
        %438 = vmatprep.subr.mxu0 0.0
        %439 = vmatpush1.msra.mxu0 0.0
        %440 = vmatprep.subr.mxu0 0.0
        %441 = vmatpush1.msra.mxu0 0.0
        %442 = vmatprep.subr.mxu0 0.0
        %443 = vmatpush1.msra.mxu0 0.0
        %444 = vmatprep.subr.mxu0 0.0
        %445 = vmatpush1.msra.mxu0 0.0
        %446 = vmatprep.mubr.f32.mxu0 0.0
        %447 = vmatmul.mubr.f32.gmra.mrb[0].mxu0 %v262
        %v448 = vpop.f32.mrb[0].mxu0
        %v449 = vadd.f32 0.0, %v448
        %v450 = vpop.f32.mrb[0].mxu0
        %451 = vdwg.mxu0
        %v452 = vmul.f32 %v378, 0.125
        %vm453 = vcmask 523264
        %v455 = vsel %vm453, %v452, 0
        %v458 = vsel %vm453, %v380, 0
        %460 = vmatprep.subr.mxu0 0.0
        %461 = vmatpush1.xpose.msra.mxu0 %v458
        %462 = vmatprep.subr.mxu0 0.0
        %463 = vmatpush1.xpose.msra.mxu0 0.0
        %464 = vmatprep.subr.mxu0 0.0
        %465 = vmatpush1.xpose.msra.mxu0 0.0
        %466 = vmatprep.subr.mxu0 0.0
        %467 = vmatpush1.xpose.msra.mxu0 0.0
        %468 = vmatprep.subr.mxu0 0.0
        %469 = vmatpush1.xpose.msra.mxu0 0.0
        %470 = vmatprep.subr.mxu0 0.0
        %471 = vmatpush1.xpose.msra.mxu0 0.0
        %472 = vmatprep.subr.mxu0 0.0
        %473 = vmatpush1.xpose.msra.mxu0 0.0
        %474 = vmatprep.subr.mxu0 0.0
        %475 = vmatpush1.xpose.msra.mxu0 0.0
        %476 = vmatprep.subr.mxu0 0.0
        %477 = vmatpush1.xpose.msra.mxu0 0.0
        %478 = vmatprep.subr.mxu0 0.0
        %479 = vmatpush1.xpose.msra.mxu0 0.0
        %480 = vmatprep.subr.mxu0 0.0
        %481 = vmatpush1.xpose.msra.mxu0 0.0
        %482 = vmatprep.subr.mxu0 0.0
        %483 = vmatpush1.xpose.msra.mxu0 0.0
        %484 = vmatprep.subr.mxu0 0.0
        %485 = vmatpush1.xpose.msra.mxu0 0.0
        %486 = vmatprep.subr.mxu0 0.0
        %487 = vmatpush1.xpose.msra.mxu0 0.0
        %488 = vmatprep.subr.mxu0 0.0
        %489 = vmatpush1.xpose.msra.mxu0 0.0
        %490 = vmatprep.subr.mxu0 0.0
        %491 = vmatpush1.xpose.msra.mxu0 0.0
        %492 = vmatprep.subr.mxu0 0.0
        %493 = vmatpush1.xpose.msra.mxu0 0.0
        %494 = vmatprep.subr.mxu0 0.0
        %495 = vmatpush1.xpose.msra.mxu0 0.0
        %496 = vmatprep.subr.mxu0 0.0
        %497 = vmatpush1.xpose.msra.mxu0 0.0
        %498 = vmatprep.subr.mxu0 0.0
        %499 = vmatpush1.xpose.msra.mxu0 0.0
        %500 = vmatprep.subr.mxu0 0.0
        %501 = vmatpush1.xpose.msra.mxu0 0.0
        %502 = vmatprep.subr.mxu0 0.0
        %503 = vmatpush1.xpose.msra.mxu0 0.0
        %504 = vmatprep.subr.mxu0 0.0
        %505 = vmatpush1.xpose.msra.mxu0 0.0
        %506 = vmatprep.subr.mxu0 0.0
        %507 = vmatpush1.xpose.msra.mxu0 0.0
        %508 = vmatprep.subr.mxu0 0.0
        %509 = vmatpush1.xpose.msra.mxu0 0.0
        %510 = vmatprep.subr.mxu0 0.0
        %511 = vmatpush1.xpose.msra.mxu0 0.0
        %512 = vmatprep.subr.mxu0 0.0
        %513 = vmatpush1.xpose.msra.mxu0 0.0
        %514 = vmatprep.subr.mxu0 0.0
        %515 = vmatpush1.xpose.msra.mxu0 0.0
        %516 = vmatprep.subr.mxu0 0.0
        %517 = vmatpush1.xpose.msra.mxu0 0.0
        %518 = vmatprep.subr.mxu0 0.0
        %519 = vmatpush1.xpose.msra.mxu0 0.0
        %520 = vmatprep.subr.mxu0 0.0
        %521 = vmatpush1.xpose.msra.mxu0 0.0
        %522 = vmatprep.subr.mxu0 0.0
        %523 = vmatpush1.xpose.msra.mxu0 0.0
        %524 = vmatprep.mubr.f32.mxu0 0.0
        %525 = vmatmul.mubr.f32.gmra.mrb[0].mxu0 %v455
        %v526 = vpop.f32.mrb[0].mxu0
        %v527 = vadd.f32 0.0, %v526
        %v528 = vpop.f32.mrb[0].mxu0
        %529 = vdwg.mxu0
        %vm530 = vcmask 64512
        %v531 = vsel %vm530, %v527, -inf
        %532 = vmax.xlane.f32.xlu0 %v531
        %v533 = vpop.xlane.xlu0 %532
        %v534 = vsub.f32 %v527, %v533
        %v535 = vmul.f32 %v534, 1.442695
        %v536 = vpow.pop %v535
        %v537 = vsel %vm530, %v536, 0.0
        %538 = vadd.xlane.f32.xlu0 %v537
        %v539 = vpop.xlane.xlu0 %538
        %v541 = vsel %vm530, %v536, 0
        %543 = vmatprep.subr.mxu0 0.0
        %544 = vmatpush1.msra.mxu0 %v449
        %545 = vmatprep.subr.mxu0 0.0
        %546 = vmatpush1.msra.mxu0 0.0
        %547 = vmatprep.subr.mxu0 0.0
        %548 = vmatpush1.msra.mxu0 0.0
        %549 = vmatprep.subr.mxu0 0.0
        %550 = vmatpush1.msra.mxu0 0.0
        %551 = vmatprep.subr.mxu0 0.0
        %552 = vmatpush1.msra.mxu0 0.0
        %553 = vmatprep.subr.mxu0 0.0
        %554 = vmatpush1.msra.mxu0 0.0
        %555 = vmatprep.subr.mxu0 0.0
        %556 = vmatpush1.msra.mxu0 0.0
        %557 = vmatprep.subr.mxu0 0.0
        %558 = vmatpush1.msra.mxu0 0.0
        %559 = vmatprep.subr.mxu0 0.0
        %560 = vmatpush1.msra.mxu0 0.0
        %561 = vmatprep.subr.mxu0 0.0
        %562 = vmatpush1.msra.mxu0 0.0
        %563 = vmatprep.subr.mxu0 0.0
        %564 = vmatpush1.msra.mxu0 0.0
        %565 = vmatprep.subr.mxu0 0.0
        %566 = vmatpush1.msra.mxu0 0.0
        %567 = vmatprep.subr.mxu0 0.0
        %568 = vmatpush1.msra.mxu0 0.0
        %569 = vmatprep.subr.mxu0 0.0
        %570 = vmatpush1.msra.mxu0 0.0
        %571 = vmatprep.subr.mxu0 0.0
        %572 = vmatpush1.msra.mxu0 0.0
        %573 = vmatprep.subr.mxu0 0.0
        %574 = vmatpush1.msra.mxu0 0.0
        %575 = vmatprep.subr.mxu0 0.0
        %576 = vmatpush1.msra.mxu0 0.0
        %577 = vmatprep.subr.mxu0 0.0
        %578 = vmatpush1.msra.mxu0 0.0
        %579 = vmatprep.subr.mxu0 0.0
        %580 = vmatpush1.msra.mxu0 0.0
        %581 = vmatprep.subr.mxu0 0.0
        %582 = vmatpush1.msra.mxu0 0.0
        %583 = vmatprep.subr.mxu0 0.0
        %584 = vmatpush1.msra.mxu0 0.0
        %585 = vmatprep.subr.mxu0 0.0
        %586 = vmatpush1.msra.mxu0 0.0
        %587 = vmatprep.subr.mxu0 0.0
        %588 = vmatpush1.msra.mxu0 0.0
        %589 = vmatprep.subr.mxu0 0.0
        %590 = vmatpush1.msra.mxu0 0.0
        %591 = vmatprep.subr.mxu0 0.0
        %592 = vmatpush1.msra.mxu0 0.0
        %593 = vmatprep.subr.mxu0 0.0
        %594 = vmatpush1.msra.mxu0 0.0
        %595 = vmatprep.subr.mxu0 0.0
        %596 = vmatpush1.msra.mxu0 0.0
        %597 = vmatprep.subr.mxu0 0.0
        %598 = vmatpush1.msra.mxu0 0.0
        %599 = vmatprep.subr.mxu0 0.0
        %600 = vmatpush1.msra.mxu0 0.0
        %601 = vmatprep.subr.mxu0 0.0
        %602 = vmatpush1.msra.mxu0 0.0
        %603 = vmatprep.subr.mxu0 0.0
        %604 = vmatpush1.msra.mxu0 0.0
        %605 = vmatprep.subr.mxu0 0.0
        %606 = vmatpush1.msra.mxu0 0.0
        %607 = vmatprep.mubr.f32.mxu0 0.0
        %608 = vmatmul.mubr.f32.gmra.mrb[0].mxu0 %v541
        %v609 = vpop.f32.mrb[0].mxu0
        %v610 = vadd.f32 0.0, %v609
        %v611 = vpop.f32.mrb[0].mxu0
        %612 = vdwg.mxu0
        %v613 = vrcp.pop %v539
        %v614 = vmul.f32 %v610, %v613
        %615 = vst.msk [vmem:[#allocation2] sm:$0xff] %vm453, %v614
        %616 = vrot.lane.b32.xlu0 %v452, 64
        %v617 = vpop.permute.xlu0 %616
        %618 = vrot.lane.b32.xlu0 %v380, 64
        %v619 = vpop.permute.xlu0 %618
        %v620 = vsel %vm453, %v617, 0
        %v622 = vsel %vm453, %v619, 0
        %624 = vmatprep.subr.mxu0 0.0
        %625 = vmatpush1.xpose.msra.mxu0 %v622
        %626 = vmatprep.subr.mxu0 0.0
        %627 = vmatpush1.xpose.msra.mxu0 0.0
        %628 = vmatprep.subr.mxu0 0.0
        %629 = vmatpush1.xpose.msra.mxu0 0.0
        %630 = vmatprep.subr.mxu0 0.0
        %631 = vmatpush1.xpose.msra.mxu0 0.0
        %632 = vmatprep.subr.mxu0 0.0
        %633 = vmatpush1.xpose.msra.mxu0 0.0
        %634 = vmatprep.subr.mxu0 0.0
        %635 = vmatpush1.xpose.msra.mxu0 0.0
        %636 = vmatprep.subr.mxu0 0.0
        %637 = vmatpush1.xpose.msra.mxu0 0.0
        %638 = vmatprep.subr.mxu0 0.0
        %639 = vmatpush1.xpose.msra.mxu0 0.0
        %640 = vmatprep.subr.mxu0 0.0
        %641 = vmatpush1.xpose.msra.mxu0 0.0
        %642 = vmatprep.subr.mxu0 0.0
        %643 = vmatpush1.xpose.msra.mxu0 0.0
        %644 = vmatprep.subr.mxu0 0.0
        %645 = vmatpush1.xpose.msra.mxu0 0.0
        %646 = vmatprep.subr.mxu0 0.0
        %647 = vmatpush1.xpose.msra.mxu0 0.0
        %648 = vmatprep.subr.mxu0 0.0
        %649 = vmatpush1.xpose.msra.mxu0 0.0
        %650 = vmatprep.subr.mxu0 0.0
        %651 = vmatpush1.xpose.msra.mxu0 0.0
        %652 = vmatprep.subr.mxu0 0.0
        %653 = vmatpush1.xpose.msra.mxu0 0.0
        %654 = vmatprep.subr.mxu0 0.0
        %655 = vmatpush1.xpose.msra.mxu0 0.0
        %656 = vmatprep.subr.mxu0 0.0
        %657 = vmatpush1.xpose.msra.mxu0 0.0
        %658 = vmatprep.subr.mxu0 0.0
        %659 = vmatpush1.xpose.msra.mxu0 0.0
        %660 = vmatprep.subr.mxu0 0.0
        %661 = vmatpush1.xpose.msra.mxu0 0.0
        %662 = vmatprep.subr.mxu0 0.0
        %663 = vmatpush1.xpose.msra.mxu0 0.0
        %664 = vmatprep.subr.mxu0 0.0
        %665 = vmatpush1.xpose.msra.mxu0 0.0
        %666 = vmatprep.subr.mxu0 0.0
        %667 = vmatpush1.xpose.msra.mxu0 0.0
        %668 = vmatprep.subr.mxu0 0.0
        %669 = vmatpush1.xpose.msra.mxu0 0.0
        %670 = vmatprep.subr.mxu0 0.0
        %671 = vmatpush1.xpose.msra.mxu0 0.0
        %672 = vmatprep.subr.mxu0 0.0
        %673 = vmatpush1.xpose.msra.mxu0 0.0
        %674 = vmatprep.subr.mxu0 0.0
        %675 = vmatpush1.xpose.msra.mxu0 0.0
        %676 = vmatprep.subr.mxu0 0.0
        %677 = vmatpush1.xpose.msra.mxu0 0.0
        %678 = vmatprep.subr.mxu0 0.0
        %679 = vmatpush1.xpose.msra.mxu0 0.0
        %680 = vmatprep.subr.mxu0 0.0
        %681 = vmatpush1.xpose.msra.mxu0 0.0
        %682 = vmatprep.subr.mxu0 0.0
        %683 = vmatpush1.xpose.msra.mxu0 0.0
        %684 = vmatprep.subr.mxu0 0.0
        %685 = vmatpush1.xpose.msra.mxu0 0.0
        %686 = vmatprep.subr.mxu0 0.0
        %687 = vmatpush1.xpose.msra.mxu0 0.0
        %688 = vmatprep.mubr.f32.mxu0 0.0
        %689 = vmatmul.mubr.f32.gmra.mrb[0].mxu0 %v620
        %v690 = vpop.f32.mrb[0].mxu0
        %v691 = vadd.f32 0.0, %v690
        %v692 = vpop.f32.mrb[0].mxu0
        %693 = vdwg.mxu0
        %v694 = vsel %vm530, %v691, -inf
        %695 = vmax.xlane.f32.xlu0 %v694
        %v696 = vpop.xlane.xlu0 %695
        %v697 = vsub.f32 %v691, %v696
        %v698 = vmul.f32 %v697, 1.442695
        %v699 = vpow.pop %v698
        %v700 = vsel %vm530, %v699, 0.0
        %701 = vadd.xlane.f32.xlu0 %v700
        %v702 = vpop.xlane.xlu0 %701
        %704 = vrot.lane.b32.xlu0 %v449, 64
        %v705 = vpop.permute.xlu0 %704
        %v708 = vsel %vm530, %v699, 0
        %710 = vmatprep.subr.mxu0 0.0
        %711 = vmatpush1.msra.mxu0 %v705
        %712 = vmatprep.subr.mxu0 0.0
        %713 = vmatpush1.msra.mxu0 0.0
        %714 = vmatprep.subr.mxu0 0.0
        %715 = vmatpush1.msra.mxu0 0.0
        %716 = vmatprep.subr.mxu0 0.0
        %717 = vmatpush1.msra.mxu0 0.0
        %718 = vmatprep.subr.mxu0 0.0
        %719 = vmatpush1.msra.mxu0 0.0
        %720 = vmatprep.subr.mxu0 0.0
        %721 = vmatpush1.msra.mxu0 0.0
        %722 = vmatprep.subr.mxu0 0.0
        %723 = vmatpush1.msra.mxu0 0.0
        %724 = vmatprep.subr.mxu0 0.0
        %725 = vmatpush1.msra.mxu0 0.0
        %726 = vmatprep.subr.mxu0 0.0
        %727 = vmatpush1.msra.mxu0 0.0
        %728 = vmatprep.subr.mxu0 0.0
        %729 = vmatpush1.msra.mxu0 0.0
        %730 = vmatprep.subr.mxu0 0.0
        %731 = vmatpush1.msra.mxu0 0.0
        %732 = vmatprep.subr.mxu0 0.0
        %733 = vmatpush1.msra.mxu0 0.0
        %734 = vmatprep.subr.mxu0 0.0
        %735 = vmatpush1.msra.mxu0 0.0
        %736 = vmatprep.subr.mxu0 0.0
        %737 = vmatpush1.msra.mxu0 0.0
        %738 = vmatprep.subr.mxu0 0.0
        %739 = vmatpush1.msra.mxu0 0.0
        %740 = vmatprep.subr.mxu0 0.0
        %741 = vmatpush1.msra.mxu0 0.0
        %742 = vmatprep.subr.mxu0 0.0
        %743 = vmatpush1.msra.mxu0 0.0
        %744 = vmatprep.subr.mxu0 0.0
        %745 = vmatpush1.msra.mxu0 0.0
        %746 = vmatprep.subr.mxu0 0.0
        %747 = vmatpush1.msra.mxu0 0.0
        %748 = vmatprep.subr.mxu0 0.0
        %749 = vmatpush1.msra.mxu0 0.0
        %750 = vmatprep.subr.mxu0 0.0
        %751 = vmatpush1.msra.mxu0 0.0
        %752 = vmatprep.subr.mxu0 0.0
        %753 = vmatpush1.msra.mxu0 0.0
        %754 = vmatprep.subr.mxu0 0.0
        %755 = vmatpush1.msra.mxu0 0.0
        %756 = vmatprep.subr.mxu0 0.0
        %757 = vmatpush1.msra.mxu0 0.0
        %758 = vmatprep.subr.mxu0 0.0
        %759 = vmatpush1.msra.mxu0 0.0
        %760 = vmatprep.subr.mxu0 0.0
        %761 = vmatpush1.msra.mxu0 0.0
        %762 = vmatprep.subr.mxu0 0.0
        %763 = vmatpush1.msra.mxu0 0.0
        %764 = vmatprep.subr.mxu0 0.0
        %765 = vmatpush1.msra.mxu0 0.0
        %766 = vmatprep.subr.mxu0 0.0
        %767 = vmatpush1.msra.mxu0 0.0
        %768 = vmatprep.subr.mxu0 0.0
        %769 = vmatpush1.msra.mxu0 0.0
        %770 = vmatprep.subr.mxu0 0.0
        %771 = vmatpush1.msra.mxu0 0.0
        %772 = vmatprep.subr.mxu0 0.0
        %773 = vmatpush1.msra.mxu0 0.0
        %774 = vmatprep.mubr.f32.mxu0 0.0
        %775 = vmatmul.mubr.f32.gmra.mrb[0].mxu0 %v708
        %v776 = vpop.f32.mrb[0].mxu0
        %v777 = vadd.f32 0.0, %v776
        %v778 = vpop.f32.mrb[0].mxu0
        %779 = vdwg.mxu0
        %v780 = vrcp.pop %v702
        %v781 = vmul.f32 %v777, %v780
        %783 = vrot.lane.b32.xlu0 %v781, 64
        %v784 = vpop.permute.xlu0 %783
        %vm786 = vcmask 1048064
        %787 = vst.msk [vmem:[#allocation2] sm:$0xff] %vm786, %v784
        %v788 = vld [vmem:[#allocation2] sm:$0xff]
        %v789 = vld [vmem:[#allocation8] sm:$0xff]
        %v790 = vld [vmem:[#allocation8 + $0x8] sm:$0xff]
        %v791 = vld [vmem:[#allocation8 + $0x10] sm:$0xff]
        %v792 = vld [vmem:[#allocation8 + $0x18] sm:$0xff]
        %v793 = vld [vmem:[#allocation8 + $0x20] sm:$0xff]
        %v794 = vld [vmem:[#allocation8 + $0x28] sm:$0xff]
        %v795 = vld [vmem:[#allocation8 + $0x30] sm:$0xff]
        %v796 = vld [vmem:[#allocation8 + $0x38] sm:$0xff]
        %v797 = vld [vmem:[#allocation8 + $0x40] sm:$0xff]
        %v798 = vld [vmem:[#allocation8 + $0x48] sm:$0xff]
        %v799 = vld [vmem:[#allocation8 + $0x50] sm:$0xff]
        %v800 = vld [vmem:[#allocation8 + $0x58] sm:$0xff]
        %v801 = vld [vmem:[#allocation8 + $0x60] sm:$0xff]
        %v802 = vld [vmem:[#allocation8 + $0x68] sm:$0xff]
        %v803 = vld [vmem:[#allocation8 + $0x70] sm:$0xff]
        %v804 = vld [vmem:[#allocation8 + $0x78] sm:$0xff]
        %805 = vmatprep.subr.mxu0 0.0
        %806 = vmatpush1.msra.mxu0 %v789
        %807 = vmatprep.subr.mxu0 0.0
        %808 = vmatpush1.msra.mxu0 %v790
        %809 = vmatprep.subr.mxu0 0.0
        %810 = vmatpush1.msra.mxu0 %v791
        %811 = vmatprep.subr.mxu0 0.0
        %812 = vmatpush1.msra.mxu0 %v792
        %813 = vmatprep.subr.mxu0 0.0
        %814 = vmatpush1.msra.mxu0 %v793
        %815 = vmatprep.subr.mxu0 0.0
        %816 = vmatpush1.msra.mxu0 %v794
        %817 = vmatprep.subr.mxu0 0.0
        %818 = vmatpush1.msra.mxu0 %v795
        %819 = vmatprep.subr.mxu0 0.0
        %820 = vmatpush1.msra.mxu0 %v796
        %821 = vmatprep.subr.mxu0 0.0
        %822 = vmatpush1.msra.mxu0 %v797
        %823 = vmatprep.subr.mxu0 0.0
        %824 = vmatpush1.msra.mxu0 %v798
        %825 = vmatprep.subr.mxu0 0.0
        %826 = vmatpush1.msra.mxu0 %v799
        %827 = vmatprep.subr.mxu0 0.0
        %828 = vmatpush1.msra.mxu0 %v800
        %829 = vmatprep.subr.mxu0 0.0
        %830 = vmatpush1.msra.mxu0 %v801
        %831 = vmatprep.subr.mxu0 0.0
        %832 = vmatpush1.msra.mxu0 %v802
        %833 = vmatprep.subr.mxu0 0.0
        %834 = vmatpush1.msra.mxu0 %v803
        %835 = vmatprep.subr.mxu0 0.0
        %836 = vmatpush1.msra.mxu0 %v804
        %837 = vmatprep.subr.mxu0 0.0
        %838 = vmatpush1.msra.mxu0 0.0
        %839 = vmatprep.subr.mxu0 0.0
        %840 = vmatpush1.msra.mxu0 0.0
        %841 = vmatprep.subr.mxu0 0.0
        %842 = vmatpush1.msra.mxu0 0.0
        %843 = vmatprep.subr.mxu0 0.0
        %844 = vmatpush1.msra.mxu0 0.0
        %845 = vmatprep.subr.mxu0 0.0
        %846 = vmatpush1.msra.mxu0 0.0
        %847 = vmatprep.subr.mxu0 0.0
        %848 = vmatpush1.msra.mxu0 0.0
        %849 = vmatprep.subr.mxu0 0.0
        %850 = vmatpush1.msra.mxu0 0.0
        %851 = vmatprep.subr.mxu0 0.0
        %852 = vmatpush1.msra.mxu0 0.0
        %853 = vmatprep.subr.mxu0 0.0
        %854 = vmatpush1.msra.mxu0 0.0
        %855 = vmatprep.subr.mxu0 0.0
        %856 = vmatpush1.msra.mxu0 0.0
        %857 = vmatprep.subr.mxu0 0.0
        %858 = vmatpush1.msra.mxu0 0.0
        %859 = vmatprep.subr.mxu0 0.0
        %860 = vmatpush1.msra.mxu0 0.0
        %861 = vmatprep.subr.mxu0 0.0
        %862 = vmatpush1.msra.mxu0 0.0
        %863 = vmatprep.subr.mxu0 0.0
        %864 = vmatpush1.msra.mxu0 0.0
        %865 = vmatprep.subr.mxu0 0.0
        %866 = vmatpush1.msra.mxu0 0.0
        %867 = vmatprep.subr.mxu0 0.0
        %868 = vmatpush1.msra.mxu0 0.0
        %869 = vmatprep.mubr.f32.mxu0 0.0
        %870 = vmatmul.mubr.f32.gmra.mrb[0].mxu0 %v788
        %v871 = vpop.f32.mrb[0].mxu0
        %v872 = vadd.f32 0.0, %v871
        %v873 = vpop.f32.mrb[0].mxu0
        %874 = vdwg.mxu0
        %v875 = vadd.f32 %v242, %v872
        %876 = vst [vmem:[%s241] sm:$0xff] %v875
        %s877 = sand.u32 %s119, 1
        %s878 = scalar_lea.sflag [#allocation5], %s877
        %s879 = sand.u32 %s119, 1
        %s880 = smul.addr %s879, 8
        %s881 = scalar_lea.vmem [#allocation9], %s880
        // Predicated region
        $region49: #{tpu_custom_call.1} parent=35 // pred_check
          %p882 = pneg %p129
        $region50: #{tpu_custom_call.1} parent=35 // pred_check_branch
          %884 = sbr.rel (%p882) target = $region52
        $region51: #{tpu_custom_call.1} parent=35 // pred_region
          %s886 = ssub.s32 128, 128
          %887 = vsyncadd %s878, %s886
          %s888 = smul.addr %s22, 128
          %s889 = scalar_lea.hbm %s4, %s888
          %s891 = sshll.u32 %s881, 4
          %s892 = int_to_ptr.vmem [resolvable:$true] %s891
          %894 = dma.vmem_to_hbm [thread:$0]  %s892, 128, %s889, %s878
        $region52: #{tpu_custom_call.1} parent=35 // pred_fallthru
          _
      $region36: #{tpu_custom_call.1} parent=5 // pred_fallthru
        _
      %p895 = scmp.le.s32.totalorder 2, %s17
      // Predicated region
      $region53: #{tpu_custom_call.1} parent=5 // pred_check
        %p896 = pneg %p895
      $region54: #{tpu_custom_call.1} parent=5 // pred_check_branch
        %898 = sbr.rel (%p896) target = $region56
      $region55: #{tpu_custom_call.1} parent=5 // pred_region
        %s899 = ssub.s32 %s17, 2
        // Predicated region
        $region57: #{tpu_custom_call.1} parent=55 // pred_check
          %p900 = pneg %p135
        $region58: #{tpu_custom_call.1} parent=55 // pred_check_branch
          %902 = sbr.rel (%p900) target = $region60
        $region59: #{tpu_custom_call.1} parent=55 // pred_region
          %s903 = sand.u32 %s120, 1
          %s904 = scalar_lea.sflag [#allocation5], %s903
          %s905 = sand.u32 %s120, 1
          %s906 = smul.addr %s905, 8
          %s907 = scalar_lea.vmem [#allocation9], %s906
          %908 = dma.done %s904, 128
        $region60: #{tpu_custom_call.1} parent=55 // pred_fallthru
          _
      $region56: #{tpu_custom_call.1} parent=5 // pred_fallthru
        _
    $region6: #{tpu_custom_call.1} parent=1 // loop_footer
      %s21 = sadd.s32 1, %s17
    $region7: #{tpu_custom_call.1} parent=1 // loop_footer_branch
      %16 = sbr.rel target = $region3
    $region8: #{tpu_custom_call.1} parent=1 // loop_exit
      _
    %909 = vsyncpa [#allocation4], 1
    %s910 = scalar_lea.sflag [#allocation4], 1
    %911 = vsyncpa %s910, 1
    %912 = vsyncpa [#allocation7], 1
    %913 = vsyncpa [#allocation5], 1
    %s914 = scalar_lea.sflag [#allocation5], 1
    %915 = vsyncpa %s914, 1

</llo_original>
